<compile_context>
chip_gen: v5e
topology: v5e:2x2
jax: 0.10.0
libtpu: 0.0.40
codegen_flags: <defaults>
</compile_context>

<pallas_src>
import functools

import jax
import jax.numpy as jnp
from jax.experimental import pallas as pl
from jax.experimental.pallas import tpu as pltpu


def _round_up(x, m):
    return (x + m - 1) // m * m


def _vmem_capacity_bytes():
    """Best-effort physical VMEM size; falls back to the v7x minimum (64 MiB)."""
    try:
        info = pltpu.get_tpu_info()
        for attr in ("vmem_capacity_bytes", "vmem_size_bytes", "vmem_bytes"):
            val = getattr(info, attr, None)
            if val:
                return int(val)
    except Exception:
        pass
    return 64 * 1024 * 1024


def _pick_spatial_tile(q_target, gran, n_batch, cin, k_rows, cout_p,
                       in_item, out_item, vmem_budget):
    """Largest lane-dense flat-spatial tile TQ (multiple of `gran`) fitting the
    VMEM budget; capped so the grid has >=2 parallel steps (v7x has 2 TCs)."""
    # Approximate VMEM bytes per lane of TQ: double-buffered x tile, the
    # concat temp, the in-kernel (K, TQ) patch matrix, the f32 accumulator and
    # the double-buffered output tile.
    per_lane = (2 * cin * in_item          # x tile (double buffered)
                + 2 * cin * in_item        # halo concat temp / headroom
                + k_rows * in_item         # (K, TQ) patch matrix
                + cout_p * 4               # f32 accumulator
                + 2 * cout_p * out_item)   # output tile (double buffered)
    fixed = 2 * (cout_p * k_rows + cout_p) * max(in_item, 4)   # resident weights/bias
    avail = max(vmem_budget - fixed, per_lane * gran)
    tq = (avail // per_lane) // gran * gran
    tq = min(tq, _round_up(q_target, gran))          # never wider than the image
    tq = min(tq, max(2048 // gran, 1) * gran)        # diminishing returns past ~2K lanes
    if n_batch < 2:                                  # guarantee >=2 grid steps (v7x)
        tq = min(tq, _round_up((q_target + 1) // 2, gran))
    return max(tq, gran)


def _conv2d_gemm_kernel(xa_ref, xb_ref, w_ref, b_ref, o_ref, *,
                        tap_offsets, tq, use_halo):
    # xa_ref: (1, Cin, TQ)        flat-spatial tile of the zero-padded input
    # xb_ref: (1, Cin, HALO_PAD)  halo strip = first lanes of the next tile
    # w_ref : (Cout_p, K)         filters flattened tap-major / Cin-minor
    # b_ref : (Cout_p, 1)         f32 bias column
    # o_ref : (1, Cout_p, TQ)     lane-dense output tile
    xa = xa_ref[0]
    if use_halo:
        xw = jnp.concatenate([xa, xb_ref[0]], axis=1)      # (Cin, TQ + HALO_PAD)
    else:
        xw = xa
    # In-kernel im2col: (K, TQ) patch matrix from k*k static lane-shifted
    # slices (no HBM materialization, no reshapes), then one fused MXU GEMM.
    patches = jnp.concatenate([xw[:, off:off + tq] for off in tap_offsets],
                              axis=0)                      # (K, TQ)
    acc = jnp.dot(w_ref[...], patches, preferred_element_type=jnp.float32)
    o_ref[0] = (acc + b_ref[...]).astype(o_ref.dtype)


def single_conv2d_block(x_nchw, weight_oihw, bias, kernel_size,
                        compute_dtype=jnp.bfloat16):
    """SingleConv2DBlock.forward: Conv2d(in, out, k, stride=1, padding=(k-1)//2)."""
    pad = (kernel_size - 1) // 2
    N, Cin, H, W = x_nchw.shape
    Cout = weight_oihw.shape[0]
    kh = kw = kernel_size
    Hp, Wp = H + 2 * pad, W + 2 * pad

    out_dtype = x_nchw.dtype
    in_dtype = jnp.dtype(compute_dtype) if compute_dtype is not None else jnp.dtype(out_dtype)
    in_item = in_dtype.itemsize
    out_item = jnp.dtype(out_dtype).itemsize

    K = kh * kw * Cin
    # Dense output sublanes: pad Cout to 8 (32-bit out) / 16 (16-bit out).
    cout_mult = 16 if out_item == 2 else 8
    Cout_p = _round_up(Cout, cout_mult)

    # Flat padded-spatial coordinates: q = y * Wp + x.  Output rows live at
    # q in [0, H*Wp); filter tap (i, j) reads input at q + i*Wp + j.
    q_target = H * Wp
    halo = (kh - 1) * Wp + (kw - 1)                  # max tap offset
    halo_pad = max(128, _round_up(halo, 128))        # lane-granular halo strip
    gran = halo_pad                                  # TQ granularity (TQ % halo_pad == 0)

    vmem_cap = _vmem_capacity_bytes()
    TQ = _pick_spatial_tile(q_target, gran, N, Cin, K, Cout_p,
                            in_item, out_item, vmem_budget=vmem_cap // 2)
    n_tiles = -(-q_target // TQ)                     # cdiv
    Q_pad = n_tiles * TQ
    S_pad = Q_pad + TQ          # one spare tile so the halo view (block m+1)
                                # is always in range

    # ---- wrapper-side layout (cheap, ~1x input traffic; no im2col blow-up) --
    x_pad = jnp.pad(x_nchw, ((0, 0), (0, 0), (pad, pad), (pad, pad)))
    x_flat = x_pad.reshape(N, Cin, Hp * Wp)
    x_flat = jnp.pad(x_flat, ((0, 0), (0, 0), (0, S_pad - Hp * Wp)))
    x_flat = x_flat.astype(in_dtype)
    # TODO(synk): allow_input_fusion on this operand could fuse the pad/reshape
    # producer into the pallas_call and drop even this ~1x staging copy.

    # Filters -> (Cout_p, K), tap-major / Cin-minor (matches the in-kernel
    # patch concatenation order); bias -> f32 (Cout_p, 1).
    w_mat = jnp.transpose(weight_oihw, (0, 2, 3, 1)).reshape(Cout, K)
    w_mat = jnp.pad(w_mat, ((0, Cout_p - Cout), (0, 0))).astype(in_dtype)
    b_col = jnp.pad(bias, (0, Cout_p - Cout)).reshape(Cout_p, 1).astype(jnp.float32)

    tap_offsets = tuple(i * Wp + j for i in range(kh) for j in range(kw))
    use_halo = halo > 0
    hb = TQ // halo_pad                              # halo-view block ratio

    kernel = functools.partial(_conv2d_gemm_kernel, tap_offsets=tap_offsets,
                               tq=TQ, use_halo=use_halo)

    # TODO(synk): for very large Cin (patch matrix / weights outgrowing VMEM),
    # add an inner 'arbitrary' grid axis over taps/Cin with an f32 accumulator
    # scratch instead of shrinking TQ.
    grid = (N, n_tiles)
    flops = 2 * N * Cout_p * K * Q_pad
    bytes_accessed = (x_flat.size * in_item + w_mat.size * in_item
                      + b_col.size * 4 + N * Cout_p * Q_pad * out_item)

    in_specs = [
        # Per-step flat-spatial tile of x.
        pl.BlockSpec((1, Cin, TQ), lambda n, m: (n, 0, m)),
        # Small halo strip: first halo_pad lanes of the *next* tile (only this
        # narrow strip is re-read -> ~(halo_pad/TQ)x extra input traffic).
        # If DMA is ever exposed here, bump pipeline_mode=pl.Buffered(3).
        pl.BlockSpec((1, Cin, halo_pad), lambda n, m: (n, 0, (m + 1) * hb)),
        # Resident weights / bias (constant block index -> fetched once).
        pl.BlockSpec((Cout_p, K), lambda n, m: (0, 0)),
        pl.BlockSpec((Cout_p, 1), lambda n, m: (0, 0)),
    ]

    out_flat = pl.pallas_call(
        kernel,
        out_shape=jax.ShapeDtypeStruct((N, Cout_p, Q_pad), out_dtype),
        grid_spec=pltpu.PrefetchScalarGridSpec(
            num_scalar_prefetch=0,
            grid=grid,
            in_specs=in_specs,
            out_specs=pl.BlockSpec((1, Cout_p, TQ), lambda n, m: (n, 0, m)),
        ),
        compiler_params=pltpu.CompilerParams(
            dimension_semantics=("parallel", "parallel"),
            vmem_limit_bytes=int(vmem_cap * 3 // 4),
        ),
        cost_estimate=pl.CostEstimate(
            flops=flops, transcendentals=0, bytes_accessed=bytes_accessed),
    )(x_flat, x_flat, w_mat, b_col)

    # Undo the flat/padded layout: (N, Cout_p, Q_pad) -> (N, Cout, H, W), NCHW.
    out = out_flat[:, :Cout, :H * Wp].reshape(N, Cout, H, Wp)[:, :, :, :W]
    return out


if __name__ == "__main__":
    # Module config (small, consistent with the forward pass)
    in_planes, out_planes, kernel_size = 4, 8, 3
    N, H, W = 2, 16, 16

    key = jax.random.PRNGKey(0)
    k_x, k_w, k_b = jax.random.split(key, 3)

    x = jax.random.normal(k_x, (N, in_planes, H, W), jnp.float32)
    fan_in = in_planes * kernel_size * kernel_size
    bound = 1.0 / (fan_in ** 0.5)
    weight = jax.random.uniform(
        k_w, (out_planes, in_planes, kernel_size, kernel_size),
        jnp.float32, minval=-bound, maxval=bound)
    bias = jax.random.uniform(
        k_b, (out_planes,), jnp.float32, minval=-bound, maxval=bound)

    pad = (kernel_size - 1) // 2
    ref_f32 = jax.lax.conv_general_dilated(
        x, weight, window_strides=(1, 1),
        padding=((pad, pad), (pad, pad)),
        dimension_numbers=("NCHW", "OIHW", "NCHW"),
    ) + bias[None, :, None, None]

    # f32-operand path (bit-faithful to nn.Conv2d semantics).
    fwd_f32 = jax.jit(functools.partial(single_conv2d_block,
                                        kernel_size=kernel_size,
                                        compute_dtype=jnp.float32))
    out_f32 = jax.block_until_ready(fwd_f32(x, weight, bias))
    assert out_f32.shape == (N, out_planes, H, W)
    assert jnp.allclose(out_f32, ref_f32, atol=1e-4, rtol=1e-4)

    # Default path: bf16 operands (all generations), f32 accumulation.
    fwd = jax.jit(functools.partial(single_conv2d_block,
                                    kernel_size=kernel_size))
    out_bf16 = jax.block_until_ready(fwd(x, weight, bias))
    ref_bf16 = jax.lax.conv_general_dilated(
        x.astype(jnp.bfloat16), weight.astype(jnp.bfloat16),
        window_strides=(1, 1), padding=((pad, pad), (pad, pad)),
        dimension_numbers=("NCHW", "OIHW", "NCHW"),
        preferred_element_type=jnp.float32,
    ) + bias[None, :, None, None]
    assert out_bf16.shape == (N, out_planes, H, W)
    assert jnp.allclose(out_bf16, ref_bf16, atol=2e-2, rtol=2e-2)

    print("KERNEL_OK")
</pallas_src>

<mosaic_0001>
module attributes {stable_mosaic.version = 11 : i64} {
  func.func @_conv2d_gemm_kernel(%arg0: i32, %arg1: i32, %arg2: memref<1x4x384xf32, #tpu.memory_space<vmem>>, %arg3: memref<1x4x128xf32, #tpu.memory_space<vmem>>, %arg4: memref<8x36xf32, #tpu.memory_space<vmem>>, %arg5: memref<8x1xf32, #tpu.memory_space<vmem>>, %arg6: memref<1x8x384xf32, #tpu.memory_space<vmem>>) attributes {dimension_semantics = [#tpu.dimension_semantics<parallel>, #tpu.dimension_semantics<parallel>], iteration_bounds = array<i64: 2, 1>, scalar_prefetch = 0 : i64, scratch_operands = 0 : i64, tpu.core_type = #tpu.core_type<tc>, window_params = [{transform_indices = @transform_0, window_bounds = array<i64: 1, 4, 384>}, {transform_indices = @transform_1, window_bounds = array<i64: 1, 4, 128>}, {pipeline_mode = #tpu.pipeline_mode<synchronous>, transform_indices = @transform_2, window_bounds = array<i64: 8, 36>}, {pipeline_mode = #tpu.pipeline_mode<synchronous>, transform_indices = @transform_3, window_bounds = array<i64: 8, 1>}, {transform_indices = @transform_4, window_bounds = array<i64: 1, 8, 384>}]} {
    %c0 = arith.constant 0 : index
    %c0_0 = arith.constant 0 : index
    %c0_1 = arith.constant 0 : index
    %0 = vector.load %arg2[%c0, %c0_0, %c0_1] : memref<1x4x384xf32, #tpu.memory_space<vmem>>, vector<1x4x384xf32>
    %1 = vector.shape_cast %0 : vector<1x4x384xf32> to vector<4x384xf32>
    %c0_2 = arith.constant 0 : index
    %c0_3 = arith.constant 0 : index
    %c0_4 = arith.constant 0 : index
    %2 = vector.load %arg3[%c0_2, %c0_3, %c0_4] : memref<1x4x128xf32, #tpu.memory_space<vmem>>, vector<1x4x128xf32>
    %3 = vector.shape_cast %2 : vector<1x4x128xf32> to vector<4x128xf32>
    %4 = tpu.concatenate %1, %3 in 1 : vector<4x384xf32>, vector<4x128xf32> -> vector<4x512xf32>
    %5 = vector.extract_strided_slice %4 {offsets = [0, 0], sizes = [4, 384], strides = [1, 1]} : vector<4x512xf32> to vector<4x384xf32>
    %6 = vector.extract_strided_slice %4 {offsets = [0, 1], sizes = [4, 384], strides = [1, 1]} : vector<4x512xf32> to vector<4x384xf32>
    %7 = vector.extract_strided_slice %4 {offsets = [0, 2], sizes = [4, 384], strides = [1, 1]} : vector<4x512xf32> to vector<4x384xf32>
    %8 = vector.extract_strided_slice %4 {offsets = [0, 18], sizes = [4, 384], strides = [1, 1]} : vector<4x512xf32> to vector<4x384xf32>
    %9 = vector.extract_strided_slice %4 {offsets = [0, 19], sizes = [4, 384], strides = [1, 1]} : vector<4x512xf32> to vector<4x384xf32>
    %10 = vector.extract_strided_slice %4 {offsets = [0, 20], sizes = [4, 384], strides = [1, 1]} : vector<4x512xf32> to vector<4x384xf32>
    %11 = vector.extract_strided_slice %4 {offsets = [0, 36], sizes = [4, 384], strides = [1, 1]} : vector<4x512xf32> to vector<4x384xf32>
    %12 = vector.extract_strided_slice %4 {offsets = [0, 37], sizes = [4, 384], strides = [1, 1]} : vector<4x512xf32> to vector<4x384xf32>
    %13 = vector.extract_strided_slice %4 {offsets = [0, 38], sizes = [4, 384], strides = [1, 1]} : vector<4x512xf32> to vector<4x384xf32>
    %14 = tpu.concatenate %5, %6, %7, %8, %9, %10, %11, %12, %13 in 0 : vector<4x384xf32>, vector<4x384xf32>, vector<4x384xf32>, vector<4x384xf32>, vector<4x384xf32>, vector<4x384xf32>, vector<4x384xf32>, vector<4x384xf32>, vector<4x384xf32> -> vector<36x384xf32>
    %c0_5 = arith.constant 0 : index
    %c0_6 = arith.constant 0 : index
    %15 = vector.load %arg4[%c0_5, %c0_6] : memref<8x36xf32, #tpu.memory_space<vmem>>, vector<8x36xf32>
    %cst = arith.constant dense<0.000000e+00> : vector<8x384xf32>
    %16 = tpu.matmul %15, %14, %cst {dimension_numbers = #tpu.dot_dimension_numbers<[1], [0], [0], [1], [0, 0, 1, 1], [], []>} : vector<8x36xf32>, vector<36x384xf32>, vector<8x384xf32> -> vector<8x384xf32>
    %c0_7 = arith.constant 0 : index
    %c0_8 = arith.constant 0 : index
    %17 = vector.load %arg5[%c0_7, %c0_8] : memref<8x1xf32, #tpu.memory_space<vmem>>, vector<8x1xf32>
    %18 = vector.broadcast %17 : vector<8x1xf32> to vector<8x384xf32>
    %19 = arith.addf %16, %18 : vector<8x384xf32>
    %c0_9 = arith.constant 0 : index
    %c0_10 = arith.constant 0 : index
    %c0_11 = arith.constant 0 : index
    %20 = vector.load %arg6[%c0_9, %c0_10, %c0_11] : memref<1x8x384xf32, #tpu.memory_space<vmem>>, vector<1x8x384xf32>
    %21 = vector.shape_cast %20 : vector<1x8x384xf32> to vector<8x384xf32>
    %22 = vector.shape_cast %19 : vector<8x384xf32> to vector<1x8x384xf32>
    tpu.vector_store %arg6[%c0_9, %c0_10, %c0_11], %22 {strides = array<i32>} : memref<1x8x384xf32, #tpu.memory_space<vmem>>, vector<1x8x384xf32>,
    return
  }
  func.func @transform_0(%arg0: i32, %arg1: i32) -> (i32, i32, i32) {
    %c0_i32 = arith.constant 0 : i32
    %c0_i32_0 = arith.constant 0 : i32
    return %arg0, %c0_i32, %arg1 : i32, i32, i32
  }
  func.func @transform_1(%arg0: i32, %arg1: i32) -> (i32, i32, i32) {
    %c1_i32 = arith.constant 1 : i32
    %0 = arith.addi %arg1, %c1_i32 : i32
    %c3_i32 = arith.constant 3 : i32
    %1 = arith.muli %0, %c3_i32 : i32
    %c0_i32 = arith.constant 0 : i32
    %c0_i32_0 = arith.constant 0 : i32
    return %arg0, %c0_i32, %1 : i32, i32, i32
  }
  func.func @transform_2(%arg0: i32, %arg1: i32) -> (i32, i32) {
    %c0_i32 = arith.constant 0 : i32
    %c0_i32_0 = arith.constant 0 : i32
    %c0_i32_1 = arith.constant 0 : i32
    return %c0_i32, %c0_i32_0 : i32, i32
  }
  func.func @transform_3(%arg0: i32, %arg1: i32) -> (i32, i32) {
    %c0_i32 = arith.constant 0 : i32
    %c0_i32_0 = arith.constant 0 : i32
    %c0_i32_1 = arith.constant 0 : i32
    return %c0_i32, %c0_i32_0 : i32, i32
  }
  func.func @transform_4(%arg0: i32, %arg1: i32) -> (i32, i32, i32) {
    %c0_i32 = arith.constant 0 : i32
    %c0_i32_0 = arith.constant 0 : i32
    return %arg0, %c0_i32, %arg1 : i32, i32, i32
  }
}

</mosaic_0001>

<llo_original>
// kernel: single_conv2d_block.1
$region0: #{single_conv2d_block.1}
  #allocation0 [shape = 'u32[]', space=smem, size = 0x4, offset = 0x4, fixed_abs, tag = 'smem constant byte address 0x4 - core index']
  #allocation1 [shape = 'u32[72,128]{1,0:T(1,128)}', space=vmem, size = 0x9000, scoped, tag = 'internal scratch']
  %s0 = inlined_call_operand.vmem [shape: f32[2,4,768], index: 0, kind: input, shape index: {}, may-alias: {0,1}]
  %s1 = inlined_call_operand.vmem [shape: f32[2,4,768], index: 1, kind: input, shape index: {}, may-alias: {0,1}]
  %s2 = inlined_call_operand.vmem [shape: f32[8,36], index: 2, kind: input, shape index: {}]
  %s3 = inlined_call_operand.vmem [shape: f32[8,1], index: 3, kind: input, shape index: {}]
  %s4 = inlined_call_operand.vmem [shape: f32[2,8,384], index: 4, kind: output, shape index: {}]
  %s5 = sld [smem:[#allocation0]]
  $region49: #{single_conv2d_block.1} parent=0
    _
  %s7 = ssub.s32 1, %s5
  %s8 = scalar_select 0, %s7, %s5
  loop: start=0, step=1, limit=4
  $region2: #{single_conv2d_block.1} parent=0 // loop_pre_header
    _
  $region3: #{single_conv2d_block.1} parent=0 // loop_header
    %s10 = sphi 0, %s14
    %p11 = scmp.ge.s32.totalorder %s10, 4
    %s17 = sphi 0, %s29
    %s18 = sphi 0, %s25
    %s19 = sphi 0, %s17
    %s20 = sphi 0, %s18
    %s21 = sphi 0, %s19
    %s22 = sphi 0, %s20
    %s34 = sphi 0, %s36
    %s37 = sphi 0, %s34
    %s38 = sphi 0, %s37
    %s54 = sphi 0, %s38
    %s66 = sphi 0, %s68
    %s69 = sphi 0, %s66
    %s70 = sphi 0, %s69
    %s86 = sphi 0, %s70
    %s90 = sphi 0, %s90
    %s92 = sphi 0, %s90
    %s93 = sphi 0, %s92
    %s107 = sphi 0, %s93
    %s111 = sphi 0, %s111
    %s113 = sphi 0, %s111
    %s114 = sphi 0, %s113
    %s128 = sphi 0, %s114
    %s136 = sphi 0, %s138
    %s139 = sphi 0, %s136
    %s140 = sphi 0, %s139
    %s156 = sphi 0, %s140
  $region4: #{single_conv2d_block.1} parent=0 // loop_header_branch
    %13 = sbr.rel (%p11) target = $region8
  $region5: #{single_conv2d_block.1} parent=0 // loop_body
    %s15 = ssub.s32 %s10, 1
    %s16 = ssub.s32 %s10, 2
    %s23 = sadd.s32 1, %s18
    %p24 = scmp.ge.s32.totalorder %s23, 1
    %s25 = scalar_select %p24, 0, %s23
    %s26 = sadd.s32 1, %s17
    %s27 = scalar_select %p24, %s26, %s17
    %p28 = scmp.ge.s32.totalorder %s27, 2
    %s29 = scalar_select %p28, 0, %s27
    %s30 = ssub.s32 %s17, %s29
    %s31 = ssub.s32 %s18, %s25
    %s32 = sor.u32 %s30, %s31
    %p33 = scmp.eq.s32.totalorder %s32, 0
    %s35 = sadd.s32 %s34, 1
    %s36 = scalar_select %p33, %s34, %s35
    %p39 = pneg %p33
    %p40 = scmp.eq.s32.totalorder %s10, 1
    %p41 = por %p39, %p40
    %p42 = scmp.ne.s32.totalorder %s34, %s37
    %p43 = scmp.eq.s32.totalorder %s10, 0
    %p44 = por %p42, %p43
    %p45 = scmp.ne.s32.totalorder %s34, %s37
    %p46 = scmp.eq.s32.totalorder %s15, 1
    %p47 = por %p45, %p46
    %p48 = scmp.ne.s32.totalorder %s37, %s38
    %p49 = scmp.eq.s32.totalorder %s15, 0
    %p50 = por %p48, %p49
    %p51 = scmp.ne.s32.totalorder %s37, %s38
    %p52 = scmp.eq.s32.totalorder %s16, 1
    %p53 = por %p51, %p52
    %p55 = scmp.ne.s32.totalorder %s38, %s54
    %p56 = scmp.eq.s32.totalorder %s16, 0
    %p57 = por %p55, %p56
    %s58 = sadd.s32 %s18, 1
    %s59 = smul.u32 %s58, 3
    %s60 = sadd.s32 %s25, 1
    %s61 = smul.u32 %s60, 3
    %s62 = ssub.s32 %s17, %s29
    %s63 = ssub.s32 %s59, %s61
    %s64 = sor.u32 %s62, %s63
    %p65 = scmp.eq.s32.totalorder %s64, 0
    %s67 = sadd.s32 %s66, 1
    %s68 = scalar_select %p65, %s66, %s67
    %p71 = pneg %p65
    %p72 = scmp.eq.s32.totalorder %s10, 1
    %p73 = por %p71, %p72
    %p74 = scmp.ne.s32.totalorder %s66, %s69
    %p75 = scmp.eq.s32.totalorder %s10, 0
    %p76 = por %p74, %p75
    %p77 = scmp.ne.s32.totalorder %s66, %s69
    %p78 = scmp.eq.s32.totalorder %s15, 1
    %p79 = por %p77, %p78
    %p80 = scmp.ne.s32.totalorder %s69, %s70
    %p81 = scmp.eq.s32.totalorder %s15, 0
    %p82 = por %p80, %p81
    %p83 = scmp.ne.s32.totalorder %s69, %s70
    %p84 = scmp.eq.s32.totalorder %s16, 1
    %p85 = por %p83, %p84
    %p87 = scmp.ne.s32.totalorder %s70, %s86
    %p88 = scmp.eq.s32.totalorder %s16, 0
    %p89 = por %p87, %p88
    %s91 = sadd.s32 %s90, 1
    %p94 = scmp.eq.s32.totalorder %s10, 1
    %p95 = scmp.ne.s32.totalorder %s90, %s92
    %p96 = scmp.eq.s32.totalorder %s10, 0
    %p97 = por %p95, %p96
    %p98 = scmp.ne.s32.totalorder %s90, %s92
    %p99 = scmp.eq.s32.totalorder %s15, 1
    %p100 = por %p98, %p99
    %p101 = scmp.ne.s32.totalorder %s92, %s93
    %p102 = scmp.eq.s32.totalorder %s15, 0
    %p103 = por %p101, %p102
    %p104 = scmp.ne.s32.totalorder %s92, %s93
    %p105 = scmp.eq.s32.totalorder %s16, 1
    %p106 = por %p104, %p105
    %p108 = scmp.ne.s32.totalorder %s93, %s107
    %p109 = scmp.eq.s32.totalorder %s16, 0
    %p110 = por %p108, %p109
    %s112 = sadd.s32 %s111, 1
    %p115 = scmp.eq.s32.totalorder %s10, 1
    %p116 = scmp.ne.s32.totalorder %s111, %s113
    %p117 = scmp.eq.s32.totalorder %s10, 0
    %p118 = por %p116, %p117
    %p119 = scmp.ne.s32.totalorder %s111, %s113
    %p120 = scmp.eq.s32.totalorder %s15, 1
    %p121 = por %p119, %p120
    %p122 = scmp.ne.s32.totalorder %s113, %s114
    %p123 = scmp.eq.s32.totalorder %s15, 0
    %p124 = por %p122, %p123
    %p125 = scmp.ne.s32.totalorder %s113, %s114
    %p126 = scmp.eq.s32.totalorder %s16, 1
    %p127 = por %p125, %p126
    %p129 = scmp.ne.s32.totalorder %s114, %s128
    %p130 = scmp.eq.s32.totalorder %s16, 0
    %p131 = por %p129, %p130
    %s132 = ssub.s32 %s17, %s29
    %s133 = ssub.s32 %s18, %s25
    %s134 = sor.u32 %s132, %s133
    %p135 = scmp.eq.s32.totalorder %s134, 0
    %s137 = sadd.s32 %s136, 1
    %s138 = scalar_select %p135, %s136, %s137
    %p141 = pneg %p135
    %p142 = scmp.eq.s32.totalorder %s10, 1
    %p143 = por %p141, %p142
    %p144 = scmp.ne.s32.totalorder %s136, %s139
    %p145 = scmp.eq.s32.totalorder %s10, 0
    %p146 = por %p144, %p145
    %p147 = scmp.ne.s32.totalorder %s136, %s139
    %p148 = scmp.eq.s32.totalorder %s15, 1
    %p149 = por %p147, %p148
    %p150 = scmp.ne.s32.totalorder %s139, %s140
    %p151 = scmp.eq.s32.totalorder %s15, 0
    %p152 = por %p150, %p151
    %p153 = scmp.ne.s32.totalorder %s139, %s140
    %p154 = scmp.eq.s32.totalorder %s16, 1
    %p155 = por %p153, %p154
    %p157 = scmp.ne.s32.totalorder %s140, %s156
    %p158 = scmp.eq.s32.totalorder %s16, 0
    %p159 = por %p157, %p158
    %p160 = scmp.le.s32.totalorder 1, %s10
    %p161 = scmp.lt.s32.totalorder %s10, 3
    %p162 = pnand %p160, %p161
    %p163 = pneg %p162
    // Predicated region
    $region9: #{single_conv2d_block.1} parent=5 // pred_check
      _
    $region10: #{single_conv2d_block.1} parent=5 // pred_check_branch
      %165 = sbr.rel (%p162) target = $region12
    $region11: #{single_conv2d_block.1} parent=5 // pred_region
      %s166 = ssub.s32 %s10, 1
      // Predicated region
      $region13: #{single_conv2d_block.1} parent=11 // pred_check
        %p167 = pneg %p103
      $region14: #{single_conv2d_block.1} parent=11 // pred_check_branch
        %169 = sbr.rel (%p167) target = $region16
      $region15: #{single_conv2d_block.1} parent=11 // pred_region
        _
      $region16: #{single_conv2d_block.1} parent=11 // pred_fallthru
        _
      // Predicated region
      $region17: #{single_conv2d_block.1} parent=11 // pred_check
        %p170 = pneg %p124
      $region18: #{single_conv2d_block.1} parent=11 // pred_check_branch
        %172 = sbr.rel (%p170) target = $region20
      $region19: #{single_conv2d_block.1} parent=11 // pred_region
        _
      $region20: #{single_conv2d_block.1} parent=11 // pred_fallthru
        _
    $region12: #{single_conv2d_block.1} parent=5 // pred_fallthru
      _
    %p173 = scmp.lt.s32.totalorder %s10, 2
    // Predicated region
    $region21: #{single_conv2d_block.1} parent=5 // pred_check
      %p174 = pneg %p173
    $region22: #{single_conv2d_block.1} parent=5 // pred_check_branch
      %176 = sbr.rel (%p174) target = $region24
    $region23: #{single_conv2d_block.1} parent=5 // pred_region
      // Predicated region
      $region25: #{single_conv2d_block.1} parent=23 // pred_check
        %p177 = pneg %p44
      $region26: #{single_conv2d_block.1} parent=23 // pred_check_branch
        %179 = sbr.rel (%p177) target = $region28
      $region27: #{single_conv2d_block.1} parent=23 // pred_region
        %s180 = smul.u32 3, %s18
        %p181 = scmp.lt.s32.totalorder %s17, 1
        %s182 = scalar_select %p181, %s17, 1
        %p183 = scmp.lt.s32.totalorder %s180, 5
        %s184 = scalar_select %p183, %s180, 5
        %s185 = smul.addr %s182, 6
        %s186 = sadd.s32 %s184, %s185
        %s187 = smul.addr %s186, 4
        %s188 = scalar_lea.vmem %s0, %s187
        %s189 = smul.u32 3, %s18
      $region28: #{single_conv2d_block.1} parent=23 // pred_fallthru
        _
      // Predicated region
      $region29: #{single_conv2d_block.1} parent=23 // pred_check
        %p190 = pneg %p76
      $region30: #{single_conv2d_block.1} parent=23 // pred_check_branch
        %192 = sbr.rel (%p190) target = $region32
      $region31: #{single_conv2d_block.1} parent=23 // pred_region
        %s193 = sadd.s32 %s18, 1
        %s194 = smul.u32 %s193, 3
        %p195 = scmp.lt.s32.totalorder %s17, 1
        %s196 = scalar_select %p195, %s17, 1
        %p197 = scmp.lt.s32.totalorder %s194, 5
        %s198 = scalar_select %p197, %s194, 5
        %s199 = smul.addr %s196, 6
        %s200 = sadd.s32 %s198, %s199
        %s201 = smul.addr %s200, 4
        %s202 = scalar_lea.vmem %s1, %s201
        %s203 = sadd.s32 %s18, 1
        %s204 = smul.u32 %s203, 3
      $region32: #{single_conv2d_block.1} parent=23 // pred_fallthru
        _
    $region24: #{single_conv2d_block.1} parent=5 // pred_fallthru
      _
    %p205 = scmp.le.s32.totalorder 1, %s10
    %p206 = scmp.lt.s32.totalorder %s10, 3
    %p207 = pnand %p205, %p206
    %p208 = pneg %p207
    // Predicated region
    $region33: #{single_conv2d_block.1} parent=5 // pred_check
      _
    $region34: #{single_conv2d_block.1} parent=5 // pred_check_branch
      %210 = sbr.rel (%p207) target = $region36
    $region35: #{single_conv2d_block.1} parent=5 // pred_region
      %s211 = ssub.s32 %s10, 1
      %s212 = smul.u32 3, %s20
      %p213 = scmp.lt.s32.totalorder %s19, 1
      %s214 = scalar_select %p213, %s19, 1
      %p215 = scmp.lt.s32.totalorder %s212, 5
      %s216 = scalar_select %p215, %s212, 5
      %s217 = smul.addr %s214, 6
      %s218 = sadd.s32 %s216, %s217
      %s219 = smul.addr %s218, 4
      %s220 = scalar_lea.vmem %s0, %s219
      %p221 = pneg %p50
      %p222 = pneg %p47
      %s223 = sadd.s32 %s20, 1
      %s224 = smul.u32 %s223, 3
      %p225 = scmp.lt.s32.totalorder %s19, 1
      %s226 = scalar_select %p225, %s19, 1
      %p227 = scmp.lt.s32.totalorder %s224, 5
      %s228 = scalar_select %p227, %s224, 5
      %s229 = smul.addr %s226, 6
      %s230 = sadd.s32 %s228, %s229
      %s231 = smul.addr %s230, 4
      %s232 = scalar_lea.vmem %s1, %s231
      %p233 = pneg %p82
      %p234 = pneg %p79
      %p235 = pneg %p103
      %p236 = pneg %p100
      %p237 = pneg %p124
      %p238 = pneg %p121
      %p239 = pneg %p152
      %p240 = pneg %p149
      %s241 = smul.u32 3, %s20
      %p242 = scmp.lt.s32.totalorder %s19, 1
      %s243 = scalar_select %p242, %s19, 1
      %p244 = scmp.lt.s32.totalorder %s241, 2
      %s245 = scalar_select %p244, %s241, 2
      %s246 = smul.addr %s243, 3
      %s247 = sadd.s32 %s245, %s246
      %s248 = smul.addr %s247, 8
      %s249 = scalar_lea.vmem %s4, %s248
      %s250 = smul.u32 3, %s20
      %p251 = scmp.lt.s32.totalorder %s19, 1
      %s252 = scalar_select %p251, %s19, 1
      %p253 = scmp.lt.s32.totalorder %s250, 5
      %s254 = scalar_select %p253, %s250, 5
      %s255 = smul.addr %s252, 6
      %s256 = sadd.s32 %s254, %s255
      %s257 = smul.addr %s256, 4
      %s258 = scalar_lea.vmem %s0, %s257
      %s259 = smul.u32 3, %s20
      %s260 = sadd.s32 %s20, 1
      %s261 = smul.u32 %s260, 3
      %p262 = scmp.lt.s32.totalorder %s19, 1
      %s263 = scalar_select %p262, %s19, 1
      %p264 = scmp.lt.s32.totalorder %s261, 5
      %s265 = scalar_select %p264, %s261, 5
      %s266 = smul.addr %s263, 6
      %s267 = sadd.s32 %s265, %s266
      %s268 = smul.addr %s267, 4
      %s269 = scalar_lea.vmem %s1, %s268
      %s270 = sadd.s32 %s20, 1
      %s271 = smul.u32 %s270, 3
      %s272 = smul.u32 3, %s20
      %p273 = scmp.lt.s32.totalorder %s19, 1
      %s274 = scalar_select %p273, %s19, 1
      %p275 = scmp.lt.s32.totalorder %s272, 2
      %s276 = scalar_select %p275, %s272, 2
      %s277 = smul.addr %s274, 3
      %s278 = sadd.s32 %s276, %s277
      %s279 = smul.addr %s278, 8
      %s280 = scalar_lea.vmem %s4, %s279
      %s281 = smul.u32 3, %s20
      %v282 = vld [vmem:[%s258] sm:$0xff]
      %v283 = vld [vmem:[%s258 + $0x8] sm:$0xf]
      %v284 = vld [vmem:[%s269] sm:$0xf]
      %287 = vst [vmem:[#allocation1] ss:$2 sm:$0xff] %v282
      %s288 = scalar_lea.vmem [#allocation1], 16
      %289 = vst [vmem:[%s288] ss:$2 sm:$0xff] %v283
      %v290 = vld.sshfl [vmem:[#allocation1] sm:$0xff pattern:$0x75316420]
      %v291 = vld.sshfl [vmem:[#allocation1 + $0x8] sm:$0xff pattern:$0x75316420]
      %v292 = vld.sshfl [vmem:[#allocation1 + $0x10] sm:$0xff pattern:$0x75316420]
      %v297 = vrot.slane %v290, 4
      %v298 = vrot.slane %v291, 4
      %v299 = vrot.slane %v292, 4
      %v300 = vrot.slane %v284, 4
      %301 = vrot.lane.b32.xlu0 %v297, 127
      %v302 = vpop.permute.xlu0 %301
      %303 = vrot.lane.b32.xlu0 %v298, 127
      %v304 = vpop.permute.xlu0 %303
      %305 = vrot.lane.b32.xlu0 %v299, 127
      %v306 = vpop.permute.xlu0 %305
      %307 = vrot.lane.b32.xlu0 %v300, 127
      %v308 = vpop.permute.xlu0 %307
      %vm309 = vcmask 1039360
      %v310 = vsel %vm309, %v302, %v304
      %v311 = vsel %vm309, %v304, %v306
      %v312 = vsel %vm309, %v306, %v308
      %316 = vrot.lane.b32.xlu0 %v290, 126
      %v317 = vpop.permute.xlu0 %316
      %318 = vrot.lane.b32.xlu0 %v291, 126
      %v319 = vpop.permute.xlu0 %318
      %320 = vrot.lane.b32.xlu0 %v292, 126
      %v321 = vpop.permute.xlu0 %320
      %322 = vrot.lane.b32.xlu0 %v284, 126
      %v323 = vpop.permute.xlu0 %322
      %vm324 = vcmask 1031168
      %v325 = vsel %vm324, %v317, %v319
      %v326 = vsel %vm324, %v319, %v321
      %v327 = vsel %vm324, %v321, %v323
      %331 = vrot.lane.b32.xlu0 %v297, 110
      %v332 = vpop.permute.xlu0 %331
      %333 = vrot.lane.b32.xlu0 %v298, 110
      %v334 = vpop.permute.xlu0 %333
      %335 = vrot.lane.b32.xlu0 %v299, 110
      %v336 = vpop.permute.xlu0 %335
      %337 = vrot.lane.b32.xlu0 %v300, 110
      %v338 = vpop.permute.xlu0 %337
      %vm339 = vcmask 900096
      %v340 = vsel %vm339, %v332, %v334
      %v341 = vsel %vm339, %v334, %v336
      %v342 = vsel %vm339, %v336, %v338
      %346 = vrot.lane.b32.xlu0 %v290, 109
      %v347 = vpop.permute.xlu0 %346
      %348 = vrot.lane.b32.xlu0 %v291, 109
      %v349 = vpop.permute.xlu0 %348
      %350 = vrot.lane.b32.xlu0 %v292, 109
      %v351 = vpop.permute.xlu0 %350
      %352 = vrot.lane.b32.xlu0 %v284, 109
      %v353 = vpop.permute.xlu0 %352
      %vm354 = vcmask 891904
      %v355 = vsel %vm354, %v347, %v349
      %v356 = vsel %vm354, %v349, %v351
      %v357 = vsel %vm354, %v351, %v353
      %361 = vrot.lane.b32.xlu0 %v297, 108
      %v362 = vpop.permute.xlu0 %361
      %363 = vrot.lane.b32.xlu0 %v298, 108
      %v364 = vpop.permute.xlu0 %363
      %365 = vrot.lane.b32.xlu0 %v299, 108
      %v366 = vpop.permute.xlu0 %365
      %367 = vrot.lane.b32.xlu0 %v300, 108
      %v368 = vpop.permute.xlu0 %367
      %vm369 = vcmask 883712
      %v370 = vsel %vm369, %v362, %v364
      %v371 = vsel %vm369, %v364, %v366
      %v372 = vsel %vm369, %v366, %v368
      %376 = vrot.lane.b32.xlu0 %v290, 92
      %v377 = vpop.permute.xlu0 %376
      %378 = vrot.lane.b32.xlu0 %v291, 92
      %v379 = vpop.permute.xlu0 %378
      %380 = vrot.lane.b32.xlu0 %v292, 92
      %v381 = vpop.permute.xlu0 %380
      %382 = vrot.lane.b32.xlu0 %v284, 92
      %v383 = vpop.permute.xlu0 %382
      %vm384 = vcmask 752640
      %v385 = vsel %vm384, %v377, %v379
      %v386 = vsel %vm384, %v379, %v381
      %v387 = vsel %vm384, %v381, %v383
      %391 = vrot.lane.b32.xlu0 %v297, 91
      %v392 = vpop.permute.xlu0 %391
      %393 = vrot.lane.b32.xlu0 %v298, 91
      %v394 = vpop.permute.xlu0 %393
      %395 = vrot.lane.b32.xlu0 %v299, 91
      %v396 = vpop.permute.xlu0 %395
      %397 = vrot.lane.b32.xlu0 %v300, 91
      %v398 = vpop.permute.xlu0 %397
      %vm399 = vcmask 744448
      %v400 = vsel %vm399, %v392, %v394
      %v401 = vsel %vm399, %v394, %v396
      %v402 = vsel %vm399, %v396, %v398
      %406 = vrot.lane.b32.xlu0 %v290, 90
      %v407 = vpop.permute.xlu0 %406
      %408 = vrot.lane.b32.xlu0 %v291, 90
      %v409 = vpop.permute.xlu0 %408
      %410 = vrot.lane.b32.xlu0 %v292, 90
      %v411 = vpop.permute.xlu0 %410
      %412 = vrot.lane.b32.xlu0 %v284, 90
      %v413 = vpop.permute.xlu0 %412
      %vm414 = vcmask 736256
      %v415 = vsel %vm414, %v407, %v409
      %v416 = vsel %vm414, %v409, %v411
      %v417 = vsel %vm414, %v411, %v413
      %vm418 = vcmask 1043456
      %v419 = vsel %vm418, %v290, %v310
      %v420 = vsel %vm418, %v291, %v311
      %v421 = vsel %vm418, %v292, %v312
      %v422 = vsel %vm418, %v325, %v340
      %v423 = vsel %vm418, %v326, %v341
      %v424 = vsel %vm418, %v327, %v342
      %v425 = vsel %vm418, %v355, %v370
      %v426 = vsel %vm418, %v356, %v371
      %v427 = vsel %vm418, %v357, %v372
      %v428 = vsel %vm418, %v385, %v400
      %v429 = vsel %vm418, %v386, %v401
      %v430 = vsel %vm418, %v387, %v402
      %v431 = vld [vmem:[%s2] sm:$0xff]
      %v432 = vld [vmem:[%s3] sm:$0xff]
      %434 = vset.pattern.permute.xlu0 0
      %435 = vperm.xlu0 %434, %v432
      %v436 = vpop.permute.xlu0 %435
      %vm438 = vcmask 293888
      %v440 = vsel %vm438, %v431, 0
      %v442 = vsel %vm418, %v415, 0
      %v444 = vsel %vm418, %v416, 0
      %v446 = vsel %vm418, %v417, 0
      %448 = vmatpush.msra.mxu0 0.0
      %449 = vmatpush.msra.mxu0 0.0
      %450 = vmatpush.msra.mxu0 0.0
      %451 = vmatpush.msra.mxu0 0.0
      %452 = vmatpush.msra.mxu0 0.0
      %453 = vmatpush.msra.mxu0 0.0
      %454 = vmatpush.msra.mxu0 0.0
      %455 = vmatpush.msra.mxu0 0.0
      %456 = vmatpush.msra.mxu0 0.0
      %457 = vmatpush.msra.mxu0 0.0
      %458 = vmatpush.msra.mxu0 0.0
      %459 = vmatpush.msra.mxu0 %v442
      %460 = vmatpush.msra.mxu0 %v428
      %461 = vmatpush.msra.mxu0 %v425
      %462 = vmatpush.msra.mxu0 %v422
      %463 = vmatpush.msra.mxu0 %v419
      %464 = vmatmul.f32.gmra.mxu0 %v440
      %v465 = vpop.f32.mrf.mxu0
      %v466 = vadd.f32 %v436, %v465
      %467 = vdwg.mxu0
      %468 = vmatpush.msra.mxu0 0.0
      %469 = vmatpush.msra.mxu0 0.0
      %470 = vmatpush.msra.mxu0 0.0
      %471 = vmatpush.msra.mxu0 0.0
      %472 = vmatpush.msra.mxu0 0.0
      %473 = vmatpush.msra.mxu0 0.0
      %474 = vmatpush.msra.mxu0 0.0
      %475 = vmatpush.msra.mxu0 0.0
      %476 = vmatpush.msra.mxu0 0.0
      %477 = vmatpush.msra.mxu0 0.0
      %478 = vmatpush.msra.mxu0 0.0
      %479 = vmatpush.msra.mxu0 %v444
      %480 = vmatpush.msra.mxu0 %v429
      %481 = vmatpush.msra.mxu0 %v426
      %482 = vmatpush.msra.mxu0 %v423
      %483 = vmatpush.msra.mxu0 %v420
      %484 = vmatmul.f32.gmra.mxu0 %v440
      %v485 = vpop.f32.mrf.mxu0
      %v486 = vadd.f32 %v436, %v485
      %487 = vdwg.mxu0
      %488 = vmatpush.msra.mxu0 0.0
      %489 = vmatpush.msra.mxu0 0.0
      %490 = vmatpush.msra.mxu0 0.0
      %491 = vmatpush.msra.mxu0 0.0
      %492 = vmatpush.msra.mxu0 0.0
      %493 = vmatpush.msra.mxu0 0.0
      %494 = vmatpush.msra.mxu0 0.0
      %495 = vmatpush.msra.mxu0 0.0
      %496 = vmatpush.msra.mxu0 0.0
      %497 = vmatpush.msra.mxu0 0.0
      %498 = vmatpush.msra.mxu0 0.0
      %499 = vmatpush.msra.mxu0 %v446
      %500 = vmatpush.msra.mxu0 %v430
      %501 = vmatpush.msra.mxu0 %v427
      %502 = vmatpush.msra.mxu0 %v424
      %503 = vmatpush.msra.mxu0 %v421
      %504 = vmatmul.f32.gmra.mxu0 %v440
      %v505 = vpop.f32.mrf.mxu0
      %v506 = vadd.f32 %v436, %v505
      %507 = vdwg.mxu0
      %508 = vst [vmem:[%s280] sm:$0xff] %v466
      %509 = vst [vmem:[%s280 + $0x8] sm:$0xff] %v486
      %510 = vst [vmem:[%s280 + $0x10] sm:$0xff] %v506
      %s511 = smul.u32 3, %s20
      %p512 = scmp.lt.s32.totalorder %s19, 1
      %s513 = scalar_select %p512, %s19, 1
      %p514 = scmp.lt.s32.totalorder %s511, 2
      %s515 = scalar_select %p514, %s511, 2
      %s516 = smul.addr %s513, 3
      %s517 = sadd.s32 %s515, %s516
      %s518 = smul.addr %s517, 8
      %s519 = scalar_lea.vmem %s4, %s518
      // Predicated region
      $region37: #{single_conv2d_block.1} parent=35 // pred_check
        %p520 = pneg %p149
      $region38: #{single_conv2d_block.1} parent=35 // pred_check_branch
        %522 = sbr.rel (%p520) target = $region40
      $region39: #{single_conv2d_block.1} parent=35 // pred_region
        %s523 = smul.u32 3, %s20
      $region40: #{single_conv2d_block.1} parent=35 // pred_fallthru
        _
    $region36: #{single_conv2d_block.1} parent=5 // pred_fallthru
      _
    %p524 = scmp.le.s32.totalorder 2, %s10
    // Predicated region
    $region41: #{single_conv2d_block.1} parent=5 // pred_check
      %p525 = pneg %p524
    $region42: #{single_conv2d_block.1} parent=5 // pred_check_branch
      %527 = sbr.rel (%p525) target = $region44
    $region43: #{single_conv2d_block.1} parent=5 // pred_region
      %s528 = ssub.s32 %s10, 2
      // Predicated region
      $region45: #{single_conv2d_block.1} parent=43 // pred_check
        %p529 = pneg %p155
      $region46: #{single_conv2d_block.1} parent=43 // pred_check_branch
        %531 = sbr.rel (%p529) target = $region48
      $region47: #{single_conv2d_block.1} parent=43 // pred_region
        %s532 = smul.u32 3, %s22
        %p533 = scmp.lt.s32.totalorder %s21, 1
        %s534 = scalar_select %p533, %s21, 1
        %p535 = scmp.lt.s32.totalorder %s532, 2
        %s536 = scalar_select %p535, %s532, 2
        %s537 = smul.addr %s534, 3
        %s538 = sadd.s32 %s536, %s537
        %s539 = smul.addr %s538, 8
        %s540 = scalar_lea.vmem %s4, %s539
      $region48: #{single_conv2d_block.1} parent=43 // pred_fallthru
        _
    $region44: #{single_conv2d_block.1} parent=5 // pred_fallthru
      _
  $region6: #{single_conv2d_block.1} parent=0 // loop_footer
    %s14 = sadd.s32 1, %s10
  $region7: #{single_conv2d_block.1} parent=0 // loop_footer_branch
    %9 = sbr.rel target = $region3
  $region8: #{single_conv2d_block.1} parent=0 // loop_exit
    _

</llo_original>
